<compile_context>
chip_gen: v5e
topology: v5e:2x2
jax: 0.10.0
libtpu: 0.0.40
codegen_flags: <defaults>
</compile_context>

<pallas_src>
import functools

import jax
import jax.numpy as jnp
from jax.experimental import pallas as pl
from jax.experimental.pallas import tpu as pltpu


def _round_up(x, m):
    return (x + m - 1) // m * m


def _cdiv(a, b):
    return -(-a // b)


def _mlp_kernel(num_silu_layers, n, *refs):
    """Transposed MLP over one lane-tile of relative positions.

    refs = [w0, b0, w1, b1, ..., w_last, b_last, out_ref]
      w_i : (out, in)  -- PyTorch Linear layout (hidden/final W may be bf16)
      b_i : (out, 1)   -- f32
      out : (H_pad, r_tile)   heads on sublanes, positions on lanes
    """
    out_ref = refs[-1]
    param_refs = refs[:-1]
    r_tile = out_ref.shape[-1]

    # Relative offsets for this tile, generated on the VPU (no input DMA).
    col0 = pl.program_id(0) * r_tile
    lane = jax.lax.broadcasted_iota(jnp.int32, (1, r_tile), 1)
    x = (lane + (col0 - (n - 1))).astype(jnp.float32)           # (1, r_tile)

    # Layer 0: in_features == 1 -> broadcast multiply, not a K=1 matmul.
    w0 = param_refs[0][...].astype(jnp.float32)                 # (dim, 1)
    b0 = param_refs[1][...]                                     # (dim, 1)
    h = w0 * x + b0                                             # (dim, r_tile) f32
    h = h * jax.nn.sigmoid(h)                                   # SiLU (f32 VPU/EUP)

    idx = 2
    for _ in range(num_silu_layers - 1):
        w = param_refs[idx][...]                                # (dim, dim)
        b = param_refs[idx + 1][...]                            # (dim, 1)
        # Dot operands follow the weight dtype (bf16 at large dim); the
        # accumulation / bias / SiLU chain stays f32.
        h = jnp.dot(w, h.astype(w.dtype),
                    preferred_element_type=jnp.float32) + b
        h = h * jax.nn.sigmoid(h)                               # SiLU
        idx += 2

    w = param_refs[idx][...]                                    # (H_pad, dim)
    b = param_refs[idx + 1][...]                                # (H_pad, 1)
    out = jnp.dot(w, h.astype(w.dtype),
                  preferred_element_type=jnp.float32) + b
    out_ref[...] = out.astype(out_ref.dtype)


def init_params(key, *, dim, heads, layers):
    """Deterministic synthetic params in PyTorch Linear layout: (W (out,in), b (out,))."""
    shapes = [(dim, 1)] + [(dim, dim)] * (layers - 1) + [(heads, dim)]
    params = []
    for i, (fan_out, fan_in) in enumerate(shapes):
        kw, kb = jax.random.split(jax.random.fold_in(key, i))
        bound = 1.0 / (fan_in ** 0.5)
        w = jax.random.uniform(kw, (fan_out, fan_in), jnp.float32, -bound, bound)
        b = jax.random.uniform(kb, (fan_out,), jnp.float32, -bound, bound)
        params.append((w, b))
    return params


def _choose_r_tile(R, *, max_r_tile=1024):
    """Widest lane tile (multiple of 128, <= max_r_tile) that still leaves at
    least two grid steps whenever R spans more than one 128-lane column, so
    the 'parallel' R axis can be split across v7x's two TensorCores."""
    n_cols = _cdiv(max(R, 1), 128)
    if n_cols <= 1:
        return 128
    max_cols = max(max_r_tile // 128, 1)
    cols = min(max_cols, _cdiv(n_cols, 2))
    return cols * 128


def relative_position_bias(n, params, *, heads, layers,
                           r_tile=None, max_r_tile=1024,
                           dot_dtype=None, out_dtype=jnp.float32,
                           return_table=False):
    """Relative-position bias, (heads, n, n) (or the compact (heads, 2n-1) table)."""
    dim = params[0][0].shape[0]
    if dot_dtype is None:
        # bf16 MXU pays off once dim is large enough to be MXU-bound; at small
        # dim keep f32 (MXU idle anyway; keeps the f32 reference check exact
        # and keeps v5e's non-bf16 elementwise path untouched).
        dot_dtype = jnp.bfloat16 if dim >= 256 else jnp.float32

    R = 2 * n - 1
    if r_tile is None:
        r_tile = _choose_r_tile(R, max_r_tile=max_r_tile)
    r_tile = _round_up(r_tile, 128)        # lane axis: multiple of 128
    R_pad = _round_up(R, r_tile)
    num_tiles = R_pad // r_tile
    H_pad = _round_up(heads, 8)            # sublane axis: multiple of 8

    flat = []
    last = len(params) - 1
    for i, (w, b) in enumerate(params):
        if i == last and H_pad != heads:
            w = jnp.pad(w, ((0, H_pad - heads), (0, 0)))
            b = jnp.pad(b, ((0, H_pad - heads),))
        if i > 0:
            w = w.astype(dot_dtype)        # MXU operands only; biases stay f32
        flat.append(w)                               # (out, in)
        flat.append(b.reshape(-1, 1).astype(jnp.float32))   # (out, 1), 2D for VMEM tiling
    # TODO(synk): at very large dim each (out, 1) bias tile-pads to (out, 128)
    # in VMEM; fold biases into the matmul (ones row / extra K column) if that
    # ever shows up in the VMEM budget.

    def _padded_bytes(a):
        rows = _round_up(a.shape[0], 32)   # generous: covers f32/bf16 sublane packing
        cols = _round_up(a.shape[1], 128)
        return rows * cols * a.dtype.itemsize

    param_bytes = sum(_padded_bytes(a) for a in flat)
    # Constant-index parameter blocks never change, so double-buffering them is
    # pure VMEM waste; single-buffer once they're big enough to matter (gated
    # so tiny configs keep the default, well-tested pipeline path).
    single_buffer = param_bytes >= (2 << 20)
    buffers = 1 if single_buffer else 2

    def _const_spec(a):
        # NOTE: `lambda i: (0, 0)` deliberately ignores the grid index -- the
        # parameter block is constant and stays VMEM-resident across every
        # grid step.  (It does not capture any loop variable; do not "fix".)
        if single_buffer:
            return pl.BlockSpec(a.shape, lambda i: (0, 0),
                                pipeline_mode=pl.Buffered(1))
        return pl.BlockSpec(a.shape, lambda i: (0, 0))

    in_specs = [_const_spec(a) for a in flat]

    out_tile_bytes = H_pad * r_tile * jnp.dtype(out_dtype).itemsize
    # Explicit scoped-VMEM budget: clears v5e's 16 MiB default, stays within
    # v7x's 64 MiB physical per TensorCore.
    vmem_limit = int(min(
        64 << 20,
        max(32 << 20, param_bytes * buffers + 2 * out_tile_bytes + (8 << 20)),
    ))

    table_t = pl.pallas_call(
        functools.partial(_mlp_kernel, layers, n),
        out_shape=jax.ShapeDtypeStruct((H_pad, R_pad), out_dtype),
        grid=(num_tiles,),
        in_specs=in_specs,
        out_specs=pl.BlockSpec((H_pad, r_tile), lambda i: (0, i)),
        compiler_params=pltpu.CompilerParams(
            dimension_semantics=("parallel",),
            vmem_limit_bytes=vmem_limit),
    )(*flat)

    table = table_t[:heads, :R]                       # (heads, 2n-1)
    if return_table:
        # Preferred at production n: fuse the Toeplitz lookup (row i is
        # table[:, i:i+n] reversed along lanes) into the consuming attention
        # kernel instead of materializing heads*n*n in HBM.
        return table

    # TODO(synk): fuse this gather into the consumer for large n; here it stays
    # an XLA gather (pass out_dtype=bf16 to halve the materialized HBM bytes).
    pos = jnp.arange(n)
    rel_pos = pos[:, None] - pos[None, :] + (n - 1)   # (n, n) in [0, 2n-2]
    return table[:, rel_pos]                          # (heads, n, n)


def _reference(n, params):
    """Pure-JAX reference mirroring the PyTorch forward (W stored (out, in))."""
    x = jnp.arange(-n + 1, n, dtype=jnp.float32).reshape(-1, 1)
    for i, (w, b) in enumerate(params):
        x = x @ w.T + b
        if i < len(params) - 1:
            x = x * jax.nn.sigmoid(x)
    pos = jnp.arange(n)
    rel_pos = pos[:, None] - pos[None, :] + (n - 1)
    return jnp.transpose(x[rel_pos], (2, 0, 1))


if __name__ == "__main__":
    key = jax.random.PRNGKey(0)

    # Small demo shape consistent with the module (n=8 positions, dim=32 MLP,
    # 4 heads, 3 SiLU layers).  dim < 256 -> f32 dots, so 1e-5 check holds.
    n, dim, heads, layers = 8, 32, 4, 3
    params = init_params(key, dim=dim, heads=heads, layers=layers)

    out = relative_position_bias(n, params, heads=heads, layers=layers)
    out = jax.block_until_ready(out)
    ref = _reference(n, params)
    assert out.shape == (heads, n, n), out.shape
    assert jnp.allclose(out, ref, atol=1e-5, rtol=1e-5), "mismatch vs reference (small)"

    # Second check: a larger n exercises the multi-tile grid path
    # (R=399 -> r_tile=256, grid=(2,), both v7x TensorCores active).
    # Looser tolerance: it guards tiling/indexing, not matmul rounding, since
    # activation magnitudes grow with n and MXU/XLA f32 rounding may differ.
    n2 = 200
    out2 = relative_position_bias(n2, params, heads=heads, layers=layers)
    out2 = jax.block_until_ready(out2)
    ref2 = _reference(n2, params)
    assert out2.shape == (heads, n2, n2), out2.shape
    assert jnp.allclose(out2, ref2, atol=5e-2, rtol=5e-2), "mismatch vs reference (grid>1)"

    print("KERNEL_OK")
</pallas_src>

<mosaic_0001>
module attributes {stable_mosaic.version = 11 : i64} {
  func.func @_mlp_kernel(%arg0: i32, %arg1: memref<32x1xf32, #tpu.memory_space<vmem>>, %arg2: memref<32x1xf32, #tpu.memory_space<vmem>>, %arg3: memref<32x32xf32, #tpu.memory_space<vmem>>, %arg4: memref<32x1xf32, #tpu.memory_space<vmem>>, %arg5: memref<32x32xf32, #tpu.memory_space<vmem>>, %arg6: memref<32x1xf32, #tpu.memory_space<vmem>>, %arg7: memref<8x32xf32, #tpu.memory_space<vmem>>, %arg8: memref<8x1xf32, #tpu.memory_space<vmem>>, %arg9: memref<8x128xf32, #tpu.memory_space<vmem>>) attributes {dimension_semantics = [#tpu.dimension_semantics<parallel>], iteration_bounds = array<i64: 1>, scalar_prefetch = 0 : i64, scratch_operands = 0 : i64, tpu.core_type = #tpu.core_type<tc>, window_params = [{pipeline_mode = #tpu.pipeline_mode<synchronous>, transform_indices = @transform_0, window_bounds = array<i64: 32, 1>}, {pipeline_mode = #tpu.pipeline_mode<synchronous>, transform_indices = @transform_1, window_bounds = array<i64: 32, 1>}, {pipeline_mode = #tpu.pipeline_mode<synchronous>, transform_indices = @transform_2, window_bounds = array<i64: 32, 32>}, {pipeline_mode = #tpu.pipeline_mode<synchronous>, transform_indices = @transform_3, window_bounds = array<i64: 32, 1>}, {pipeline_mode = #tpu.pipeline_mode<synchronous>, transform_indices = @transform_4, window_bounds = array<i64: 32, 32>}, {pipeline_mode = #tpu.pipeline_mode<synchronous>, transform_indices = @transform_5, window_bounds = array<i64: 32, 1>}, {pipeline_mode = #tpu.pipeline_mode<synchronous>, transform_indices = @transform_6, window_bounds = array<i64: 8, 32>}, {pipeline_mode = #tpu.pipeline_mode<synchronous>, transform_indices = @transform_7, window_bounds = array<i64: 8, 1>}, {transform_indices = @transform_8, window_bounds = array<i64: 8, 128>}]} {
    %c128_i32 = arith.constant 128 : i32
    %0 = arith.muli %arg0, %c128_i32 : i32
    %1 = tpu.iota {dimensions = array<i32: 1>} : vector<1x128xi32>
    %c7_i32 = arith.constant 7 : i32
    %2 = arith.subi %0, %c7_i32 : i32
    %3 = vector.broadcast %2 : i32 to vector<1x128xi32>
    %4 = arith.addi %1, %3 : vector<1x128xi32>
    %5 = arith.sitofp %4 : vector<1x128xi32> to vector<1x128xf32>
    %c0 = arith.constant 0 : index
    %c0_0 = arith.constant 0 : index
    %6 = vector.load %arg1[%c0, %c0_0] : memref<32x1xf32, #tpu.memory_space<vmem>>, vector<32x1xf32>
    %c0_1 = arith.constant 0 : index
    %c0_2 = arith.constant 0 : index
    %7 = vector.load %arg2[%c0_1, %c0_2] : memref<32x1xf32, #tpu.memory_space<vmem>>, vector<32x1xf32>
    %8 = vector.broadcast %6 : vector<32x1xf32> to vector<32x128xf32>
    %9 = vector.broadcast %5 : vector<1x128xf32> to vector<32x128xf32>
    %10 = arith.mulf %8, %9 : vector<32x128xf32>
    %11 = vector.broadcast %7 : vector<32x1xf32> to vector<32x128xf32>
    %12 = arith.addf %10, %11 : vector<32x128xf32>
    %13 = arith.negf %12 : vector<32x128xf32>
    %14 = math.exp %13 : vector<32x128xf32>
    %cst = arith.constant 1.000000e+00 : f32
    %15 = vector.broadcast %cst : f32 to vector<32x128xf32>
    %16 = arith.addf %15, %14 : vector<32x128xf32>
    %17 = arith.divf %15, %16 : vector<32x128xf32>
    %18 = arith.mulf %12, %17 : vector<32x128xf32>
    %c0_3 = arith.constant 0 : index
    %c0_4 = arith.constant 0 : index
    %19 = vector.load %arg3[%c0_3, %c0_4] : memref<32x32xf32, #tpu.memory_space<vmem>>, vector<32x32xf32>
    %c0_5 = arith.constant 0 : index
    %c0_6 = arith.constant 0 : index
    %20 = vector.load %arg4[%c0_5, %c0_6] : memref<32x1xf32, #tpu.memory_space<vmem>>, vector<32x1xf32>
    %cst_7 = arith.constant dense<0.000000e+00> : vector<32x128xf32>
    %21 = tpu.matmul %19, %18, %cst_7 {dimension_numbers = #tpu.dot_dimension_numbers<[1], [0], [0], [1], [0, 0, 1, 1], [], []>} : vector<32x32xf32>, vector<32x128xf32>, vector<32x128xf32> -> vector<32x128xf32>
    %22 = vector.broadcast %20 : vector<32x1xf32> to vector<32x128xf32>
    %23 = arith.addf %21, %22 : vector<32x128xf32>
    %24 = arith.negf %23 : vector<32x128xf32>
    %25 = math.exp %24 : vector<32x128xf32>
    %cst_8 = arith.constant 1.000000e+00 : f32
    %26 = vector.broadcast %cst_8 : f32 to vector<32x128xf32>
    %27 = arith.addf %26, %25 : vector<32x128xf32>
    %28 = arith.divf %26, %27 : vector<32x128xf32>
    %29 = arith.mulf %23, %28 : vector<32x128xf32>
    %c0_9 = arith.constant 0 : index
    %c0_10 = arith.constant 0 : index
    %30 = vector.load %arg5[%c0_9, %c0_10] : memref<32x32xf32, #tpu.memory_space<vmem>>, vector<32x32xf32>
    %c0_11 = arith.constant 0 : index
    %c0_12 = arith.constant 0 : index
    %31 = vector.load %arg6[%c0_11, %c0_12] : memref<32x1xf32, #tpu.memory_space<vmem>>, vector<32x1xf32>
    %cst_13 = arith.constant dense<0.000000e+00> : vector<32x128xf32>
    %32 = tpu.matmul %30, %29, %cst_13 {dimension_numbers = #tpu.dot_dimension_numbers<[1], [0], [0], [1], [0, 0, 1, 1], [], []>} : vector<32x32xf32>, vector<32x128xf32>, vector<32x128xf32> -> vector<32x128xf32>
    %33 = vector.broadcast %31 : vector<32x1xf32> to vector<32x128xf32>
    %34 = arith.addf %32, %33 : vector<32x128xf32>
    %35 = arith.negf %34 : vector<32x128xf32>
    %36 = math.exp %35 : vector<32x128xf32>
    %cst_14 = arith.constant 1.000000e+00 : f32
    %37 = vector.broadcast %cst_14 : f32 to vector<32x128xf32>
    %38 = arith.addf %37, %36 : vector<32x128xf32>
    %39 = arith.divf %37, %38 : vector<32x128xf32>
    %40 = arith.mulf %34, %39 : vector<32x128xf32>
    %c0_15 = arith.constant 0 : index
    %c0_16 = arith.constant 0 : index
    %41 = vector.load %arg7[%c0_15, %c0_16] : memref<8x32xf32, #tpu.memory_space<vmem>>, vector<8x32xf32>
    %c0_17 = arith.constant 0 : index
    %c0_18 = arith.constant 0 : index
    %42 = vector.load %arg8[%c0_17, %c0_18] : memref<8x1xf32, #tpu.memory_space<vmem>>, vector<8x1xf32>
    %cst_19 = arith.constant dense<0.000000e+00> : vector<8x128xf32>
    %43 = tpu.matmul %41, %40, %cst_19 {dimension_numbers = #tpu.dot_dimension_numbers<[1], [0], [0], [1], [0, 0, 1, 1], [], []>} : vector<8x32xf32>, vector<32x128xf32>, vector<8x128xf32> -> vector<8x128xf32>
    %44 = vector.broadcast %42 : vector<8x1xf32> to vector<8x128xf32>
    %45 = arith.addf %43, %44 : vector<8x128xf32>
    %c0_20 = arith.constant 0 : index
    %c0_21 = arith.constant 0 : index
    %46 = vector.load %arg9[%c0_20, %c0_21] : memref<8x128xf32, #tpu.memory_space<vmem>>, vector<8x128xf32>
    tpu.vector_store %arg9[%c0_20, %c0_21], %45 {strides = array<i32>} : memref<8x128xf32, #tpu.memory_space<vmem>>, vector<8x128xf32>,
    return
  }
  func.func @transform_0(%arg0: i32) -> (i32, i32) {
    %c0_i32 = arith.constant 0 : i32
    %c0_i32_0 = arith.constant 0 : i32
    %c0_i32_1 = arith.constant 0 : i32
    return %c0_i32, %c0_i32_0 : i32, i32
  }
  func.func @transform_1(%arg0: i32) -> (i32, i32) {
    %c0_i32 = arith.constant 0 : i32
    %c0_i32_0 = arith.constant 0 : i32
    %c0_i32_1 = arith.constant 0 : i32
    return %c0_i32, %c0_i32_0 : i32, i32
  }
  func.func @transform_2(%arg0: i32) -> (i32, i32) {
    %c0_i32 = arith.constant 0 : i32
    %c0_i32_0 = arith.constant 0 : i32
    %c0_i32_1 = arith.constant 0 : i32
    return %c0_i32, %c0_i32_0 : i32, i32
  }
  func.func @transform_3(%arg0: i32) -> (i32, i32) {
    %c0_i32 = arith.constant 0 : i32
    %c0_i32_0 = arith.constant 0 : i32
    %c0_i32_1 = arith.constant 0 : i32
    return %c0_i32, %c0_i32_0 : i32, i32
  }
  func.func @transform_4(%arg0: i32) -> (i32, i32) {
    %c0_i32 = arith.constant 0 : i32
    %c0_i32_0 = arith.constant 0 : i32
    %c0_i32_1 = arith.constant 0 : i32
    return %c0_i32, %c0_i32_0 : i32, i32
  }
  func.func @transform_5(%arg0: i32) -> (i32, i32) {
    %c0_i32 = arith.constant 0 : i32
    %c0_i32_0 = arith.constant 0 : i32
    %c0_i32_1 = arith.constant 0 : i32
    return %c0_i32, %c0_i32_0 : i32, i32
  }
  func.func @transform_6(%arg0: i32) -> (i32, i32) {
    %c0_i32 = arith.constant 0 : i32
    %c0_i32_0 = arith.constant 0 : i32
    %c0_i32_1 = arith.constant 0 : i32
    return %c0_i32, %c0_i32_0 : i32, i32
  }
  func.func @transform_7(%arg0: i32) -> (i32, i32) {
    %c0_i32 = arith.constant 0 : i32
    %c0_i32_0 = arith.constant 0 : i32
    %c0_i32_1 = arith.constant 0 : i32
    return %c0_i32, %c0_i32_0 : i32, i32
  }
  func.func @transform_8(%arg0: i32) -> (i32, i32) {
    %c0_i32 = arith.constant 0 : i32
    %c0_i32_0 = arith.constant 0 : i32
    return %c0_i32, %arg0 : i32, i32
  }
}

</mosaic_0001>

<llo_original>
// kernel: tpu_custom_call.1
$region0: #{tpu_custom_call.1}
  #allocation0 [shape = 'u32[]', space=smem, size = 0x4, offset = 0x4, fixed_abs, tag = 'smem constant byte address 0x4 - core index']
  #allocation1 [shape = 'u32[72,128]{1,0:T(1,128)}', space=vmem, size = 0x9000, scoped, tag = 'internal scratch']
  %s0 = inlined_call_operand.vmem [shape: f32[32,1], index: 0, kind: input, shape index: {}]
  %s1 = inlined_call_operand.vmem [shape: f32[32,1], index: 1, kind: input, shape index: {}]
  %s2 = inlined_call_operand.vmem [shape: f32[32,32], index: 2, kind: input, shape index: {}]
  %s3 = inlined_call_operand.vmem [shape: f32[32,1], index: 3, kind: input, shape index: {}]
  %s4 = inlined_call_operand.vmem [shape: f32[32,32], index: 4, kind: input, shape index: {}]
  %s5 = inlined_call_operand.vmem [shape: f32[32,1], index: 5, kind: input, shape index: {}]
  %s6 = inlined_call_operand.vmem [shape: f32[8,32], index: 6, kind: input, shape index: {}]
  %s7 = inlined_call_operand.vmem [shape: f32[8,1], index: 7, kind: input, shape index: {}]
  %s8 = inlined_call_operand.hbm [shape: f32[8,128], index: 8, kind: output, shape index: {}]
  %s9 = sld [smem:[#allocation0]]
  $region42: #{tpu_custom_call.1} parent=0
    _
  %s11 = ssub.s32 1, %s9
  %s12 = scalar_select 0, %s11, %s9
  $region1: #{tpu_custom_call.1} parent=0
    #allocation2 [shape = 'u8[4096]{0}', space=vmem, size = 0x1000, scoped, tag = 'output window, operand 0, single buffered']
    #allocation3 [shape = 's32[1]{0}', space=sflag, size = 0x4, scoped, tag = 'scoped memory for tpu_custom_call.1']
    %13 = vsyncpa [#allocation3], 0
    // Predicated region
    $region2: #{tpu_custom_call.1} parent=1 // pred_check
      _
    $region3: #{tpu_custom_call.1} parent=1 // pred_check_branch
      %15 = sbr.rel (0) target = $region5
    $region4: #{tpu_custom_call.1} parent=1 // pred_region
      _
    $region5: #{tpu_custom_call.1} parent=1 // pred_fallthru
      _
    // Predicated region
    $region6: #{tpu_custom_call.1} parent=1 // pred_check
      _
    $region7: #{tpu_custom_call.1} parent=1 // pred_check_branch
      %17 = sbr.rel (0) target = $region9
    $region8: #{tpu_custom_call.1} parent=1 // pred_region
      _
    $region9: #{tpu_custom_call.1} parent=1 // pred_fallthru
      _
    // Predicated region
    $region10: #{tpu_custom_call.1} parent=1 // pred_check
      _
    $region11: #{tpu_custom_call.1} parent=1 // pred_check_branch
      %19 = sbr.rel (0) target = $region13
    $region12: #{tpu_custom_call.1} parent=1 // pred_region
      _
    $region13: #{tpu_custom_call.1} parent=1 // pred_fallthru
      _
    // Predicated region
    $region14: #{tpu_custom_call.1} parent=1 // pred_check
      _
    $region15: #{tpu_custom_call.1} parent=1 // pred_check_branch
      %21 = sbr.rel (0) target = $region17
    $region16: #{tpu_custom_call.1} parent=1 // pred_region
      _
    $region17: #{tpu_custom_call.1} parent=1 // pred_fallthru
      _
    // Predicated region
    $region18: #{tpu_custom_call.1} parent=1 // pred_check
      _
    $region19: #{tpu_custom_call.1} parent=1 // pred_check_branch
      %23 = sbr.rel (0) target = $region21
    $region20: #{tpu_custom_call.1} parent=1 // pred_region
      _
    $region21: #{tpu_custom_call.1} parent=1 // pred_fallthru
      _
    // Predicated region
    $region22: #{tpu_custom_call.1} parent=1 // pred_check
      _
    $region23: #{tpu_custom_call.1} parent=1 // pred_check_branch
      %25 = sbr.rel (0) target = $region25
    $region24: #{tpu_custom_call.1} parent=1 // pred_region
      _
    $region25: #{tpu_custom_call.1} parent=1 // pred_fallthru
      _
    // Predicated region
    $region26: #{tpu_custom_call.1} parent=1 // pred_check
      _
    $region27: #{tpu_custom_call.1} parent=1 // pred_check_branch
      %27 = sbr.rel (0) target = $region29
    $region28: #{tpu_custom_call.1} parent=1 // pred_region
      _
    $region29: #{tpu_custom_call.1} parent=1 // pred_fallthru
      _
    // Predicated region
    $region30: #{tpu_custom_call.1} parent=1 // pred_check
      _
    $region31: #{tpu_custom_call.1} parent=1 // pred_check_branch
      %29 = sbr.rel (0) target = $region33
    $region32: #{tpu_custom_call.1} parent=1 // pred_region
      _
    $region33: #{tpu_custom_call.1} parent=1 // pred_fallthru
      _
    %s30 = smul.u32 0, 128
    %v31 = vlaneseq
    %v32 = vand.u32 %v31, 127
    %s33 = ssub.s32 %s30, 7
    %v34 = vstv %s33
    %v35 = vadd.s32 %v32, %v34
    %v36 = vcvt.s32.f32 %v35
    %v37 = vld [vmem:[%s0] sm:$0xff]
    %v38 = vld [vmem:[%s0 + $0x8] sm:$0xff]
    %v39 = vld [vmem:[%s0 + $0x10] sm:$0xff]
    %v40 = vld [vmem:[%s0 + $0x18] sm:$0xff]
    %v41 = vld [vmem:[%s1] sm:$0xff]
    %v42 = vld [vmem:[%s1 + $0x8] sm:$0xff]
    %v43 = vld [vmem:[%s1 + $0x10] sm:$0xff]
    %v44 = vld [vmem:[%s1 + $0x18] sm:$0xff]
    %46 = vset.pattern.permute.xlu0 0
    %47 = vperm.xlu0 %46, %v37
    %v48 = vpop.permute.xlu0 %47
    %51 = vset.pattern.permute.xlu0 0
    %52 = vperm.xlu0 %51, %v38
    %v53 = vpop.permute.xlu0 %52
    %56 = vset.pattern.permute.xlu0 0
    %57 = vperm.xlu0 %56, %v39
    %v58 = vpop.permute.xlu0 %57
    %61 = vset.pattern.permute.xlu0 0
    %62 = vperm.xlu0 %61, %v40
    %v63 = vpop.permute.xlu0 %62
    %v65 = vmul.f32 %v48, %v36
    %v66 = vmul.f32 %v53, %v36
    %v67 = vmul.f32 %v58, %v36
    %v68 = vmul.f32 %v63, %v36
    %70 = vset.pattern.permute.xlu0 0
    %71 = vperm.xlu0 %70, %v41
    %v72 = vpop.permute.xlu0 %71
    %75 = vset.pattern.permute.xlu0 0
    %76 = vperm.xlu0 %75, %v42
    %v77 = vpop.permute.xlu0 %76
    %80 = vset.pattern.permute.xlu0 0
    %81 = vperm.xlu0 %80, %v43
    %v82 = vpop.permute.xlu0 %81
    %85 = vset.pattern.permute.xlu0 0
    %86 = vperm.xlu0 %85, %v44
    %v87 = vpop.permute.xlu0 %86
    %v89 = vadd.f32 %v65, %v72
    %v90 = vadd.f32 %v66, %v77
    %v91 = vadd.f32 %v67, %v82
    %v92 = vadd.f32 %v68, %v87
    %v93 = vxor.u32 %v89, 2147483648
    %v94 = vxor.u32 %v90, 2147483648
    %v95 = vxor.u32 %v91, 2147483648
    %v96 = vxor.u32 %v92, 2147483648
    %v97 = vmul.f32 %v93, 1.442695
    %v98 = vpow.pop %v97
    %v99 = vmul.f32 %v94, 1.442695
    %v100 = vpow.pop %v99
    %v101 = vmul.f32 %v95, 1.442695
    %v102 = vpow.pop %v101
    %v103 = vmul.f32 %v96, 1.442695
    %v104 = vpow.pop %v103
    %v105 = vadd.f32 %v98, 1.0
    %v106 = vadd.f32 %v100, 1.0
    %v107 = vadd.f32 %v102, 1.0
    %v108 = vadd.f32 %v104, 1.0
    %v109 = vrcp.pop %v105
    %v110 = vmul.f32 %v105, %v109
    %v111 = vsub.f32 1.0, %v110
    %v112 = vmul.f32 %v109, %v111
    %v113 = vadd.f32 %v109, %v112
    %vm114 = vweird.f32 %v105
    %vm115 = vweird.f32 %v109
    %vm116 = vmor %vm114, %vm115
    %v117 = vsel %vm116, %v109, %v113
    %v118 = vand.u32 2147483647, %v105
    %vm119 = vcmp.eq.f32.partialorder %v118, 8.507059e+37
    %v120 = vand.u32 %v105, 2147483648
    %v121 = vor.u32 1.1754944e-38, %v120
    %v122 = vsel %vm119, %v121, %v117
    %v123 = vmul.f32 1.0, %v122
    %v124 = vrcp.pop %v106
    %v125 = vmul.f32 %v106, %v124
    %v126 = vsub.f32 1.0, %v125
    %v127 = vmul.f32 %v124, %v126
    %v128 = vadd.f32 %v124, %v127
    %vm129 = vweird.f32 %v106
    %vm130 = vweird.f32 %v124
    %vm131 = vmor %vm129, %vm130
    %v132 = vsel %vm131, %v124, %v128
    %v133 = vand.u32 2147483647, %v106
    %vm134 = vcmp.eq.f32.partialorder %v133, 8.507059e+37
    %v135 = vand.u32 %v106, 2147483648
    %v136 = vor.u32 1.1754944e-38, %v135
    %v137 = vsel %vm134, %v136, %v132
    %v138 = vmul.f32 1.0, %v137
    %v139 = vrcp.pop %v107
    %v140 = vmul.f32 %v107, %v139
    %v141 = vsub.f32 1.0, %v140
    %v142 = vmul.f32 %v139, %v141
    %v143 = vadd.f32 %v139, %v142
    %vm144 = vweird.f32 %v107
    %vm145 = vweird.f32 %v139
    %vm146 = vmor %vm144, %vm145
    %v147 = vsel %vm146, %v139, %v143
    %v148 = vand.u32 2147483647, %v107
    %vm149 = vcmp.eq.f32.partialorder %v148, 8.507059e+37
    %v150 = vand.u32 %v107, 2147483648
    %v151 = vor.u32 1.1754944e-38, %v150
    %v152 = vsel %vm149, %v151, %v147
    %v153 = vmul.f32 1.0, %v152
    %v154 = vrcp.pop %v108
    %v155 = vmul.f32 %v108, %v154
    %v156 = vsub.f32 1.0, %v155
    %v157 = vmul.f32 %v154, %v156
    %v158 = vadd.f32 %v154, %v157
    %vm159 = vweird.f32 %v108
    %vm160 = vweird.f32 %v154
    %vm161 = vmor %vm159, %vm160
    %v162 = vsel %vm161, %v154, %v158
    %v163 = vand.u32 2147483647, %v108
    %vm164 = vcmp.eq.f32.partialorder %v163, 8.507059e+37
    %v165 = vand.u32 %v108, 2147483648
    %v166 = vor.u32 1.1754944e-38, %v165
    %v167 = vsel %vm164, %v166, %v162
    %v168 = vmul.f32 1.0, %v167
    %v169 = vmul.f32 %v89, %v123
    %v170 = vmul.f32 %v90, %v138
    %v171 = vmul.f32 %v91, %v153
    %v172 = vmul.f32 %v92, %v168
    %v173 = vld [vmem:[%s2] sm:$0xff]
    %v174 = vld [vmem:[%s2 + $0x8] sm:$0xff]
    %v175 = vld [vmem:[%s2 + $0x10] sm:$0xff]
    %v176 = vld [vmem:[%s2 + $0x18] sm:$0xff]
    %v177 = vld [vmem:[%s3] sm:$0xff]
    %v178 = vld [vmem:[%s3 + $0x8] sm:$0xff]
    %v179 = vld [vmem:[%s3 + $0x10] sm:$0xff]
    %v180 = vld [vmem:[%s3 + $0x18] sm:$0xff]
    %182 = vset.pattern.permute.xlu0 0
    %183 = vperm.xlu0 %182, %v177
    %v184 = vpop.permute.xlu0 %183
    %187 = vset.pattern.permute.xlu0 0
    %188 = vperm.xlu0 %187, %v178
    %v189 = vpop.permute.xlu0 %188
    %192 = vset.pattern.permute.xlu0 0
    %193 = vperm.xlu0 %192, %v179
    %v194 = vpop.permute.xlu0 %193
    %197 = vset.pattern.permute.xlu0 0
    %198 = vperm.xlu0 %197, %v180
    %v199 = vpop.permute.xlu0 %198
    %vm201 = vcmask 261120
    %v203 = vsel %vm201, %v173, 0
    %v206 = vsel %vm201, %v174, 0
    %v209 = vsel %vm201, %v175, 0
    %v212 = vsel %vm201, %v176, 0
    %214 = vmatpush.msra.mxu0 0.0
    %215 = vmatpush.msra.mxu0 0.0
    %216 = vmatpush.msra.mxu0 0.0
    %217 = vmatpush.msra.mxu0 0.0
    %218 = vmatpush.msra.mxu0 0.0
    %219 = vmatpush.msra.mxu0 0.0
    %220 = vmatpush.msra.mxu0 0.0
    %221 = vmatpush.msra.mxu0 0.0
    %222 = vmatpush.msra.mxu0 0.0
    %223 = vmatpush.msra.mxu0 0.0
    %224 = vmatpush.msra.mxu0 0.0
    %225 = vmatpush.msra.mxu0 0.0
    %226 = vmatpush.msra.mxu0 %v172
    %227 = vmatpush.msra.mxu0 %v171
    %228 = vmatpush.msra.mxu0 %v170
    %229 = vmatpush.msra.mxu0 %v169
    %230 = vmatmul.f32.gmra.mxu0 %v203
    %v231 = vpop.f32.mrf.mxu0
    %v232 = vadd.f32 %v184, %v231
    %233 = vmatmul.f32.gmra.mxu0 %v206
    %v234 = vpop.f32.mrf.mxu0
    %v235 = vadd.f32 %v189, %v234
    %236 = vmatmul.f32.gmra.mxu0 %v209
    %v237 = vpop.f32.mrf.mxu0
    %v238 = vadd.f32 %v194, %v237
    %239 = vmatmul.f32.gmra.mxu0 %v212
    %v240 = vpop.f32.mrf.mxu0
    %v241 = vadd.f32 %v199, %v240
    %242 = vdwg.mxu0
    %v243 = vxor.u32 %v232, 2147483648
    %v244 = vxor.u32 %v235, 2147483648
    %v245 = vxor.u32 %v238, 2147483648
    %v246 = vxor.u32 %v241, 2147483648
    %v247 = vmul.f32 %v243, 1.442695
    %v248 = vpow.pop %v247
    %v249 = vmul.f32 %v244, 1.442695
    %v250 = vpow.pop %v249
    %v251 = vmul.f32 %v245, 1.442695
    %v252 = vpow.pop %v251
    %v253 = vmul.f32 %v246, 1.442695
    %v254 = vpow.pop %v253
    %v255 = vadd.f32 %v248, 1.0
    %v256 = vadd.f32 %v250, 1.0
    %v257 = vadd.f32 %v252, 1.0
    %v258 = vadd.f32 %v254, 1.0
    %v259 = vrcp.pop %v255
    %v260 = vmul.f32 %v255, %v259
    %v261 = vsub.f32 1.0, %v260
    %v262 = vmul.f32 %v259, %v261
    %v263 = vadd.f32 %v259, %v262
    %vm264 = vweird.f32 %v255
    %vm265 = vweird.f32 %v259
    %vm266 = vmor %vm264, %vm265
    %v267 = vsel %vm266, %v259, %v263
    %v268 = vand.u32 2147483647, %v255
    %vm269 = vcmp.eq.f32.partialorder %v268, 8.507059e+37
    %v270 = vand.u32 %v255, 2147483648
    %v271 = vor.u32 1.1754944e-38, %v270
    %v272 = vsel %vm269, %v271, %v267
    %v273 = vmul.f32 1.0, %v272
    %v274 = vrcp.pop %v256
    %v275 = vmul.f32 %v256, %v274
    %v276 = vsub.f32 1.0, %v275
    %v277 = vmul.f32 %v274, %v276
    %v278 = vadd.f32 %v274, %v277
    %vm279 = vweird.f32 %v256
    %vm280 = vweird.f32 %v274
    %vm281 = vmor %vm279, %vm280
    %v282 = vsel %vm281, %v274, %v278
    %v283 = vand.u32 2147483647, %v256
    %vm284 = vcmp.eq.f32.partialorder %v283, 8.507059e+37
    %v285 = vand.u32 %v256, 2147483648
    %v286 = vor.u32 1.1754944e-38, %v285
    %v287 = vsel %vm284, %v286, %v282
    %v288 = vmul.f32 1.0, %v287
    %v289 = vrcp.pop %v257
    %v290 = vmul.f32 %v257, %v289
    %v291 = vsub.f32 1.0, %v290
    %v292 = vmul.f32 %v289, %v291
    %v293 = vadd.f32 %v289, %v292
    %vm294 = vweird.f32 %v257
    %vm295 = vweird.f32 %v289
    %vm296 = vmor %vm294, %vm295
    %v297 = vsel %vm296, %v289, %v293
    %v298 = vand.u32 2147483647, %v257
    %vm299 = vcmp.eq.f32.partialorder %v298, 8.507059e+37
    %v300 = vand.u32 %v257, 2147483648
    %v301 = vor.u32 1.1754944e-38, %v300
    %v302 = vsel %vm299, %v301, %v297
    %v303 = vmul.f32 1.0, %v302
    %v304 = vrcp.pop %v258
    %v305 = vmul.f32 %v258, %v304
    %v306 = vsub.f32 1.0, %v305
    %v307 = vmul.f32 %v304, %v306
    %v308 = vadd.f32 %v304, %v307
    %vm309 = vweird.f32 %v258
    %vm310 = vweird.f32 %v304
    %vm311 = vmor %vm309, %vm310
    %v312 = vsel %vm311, %v304, %v308
    %v313 = vand.u32 2147483647, %v258
    %vm314 = vcmp.eq.f32.partialorder %v313, 8.507059e+37
    %v315 = vand.u32 %v258, 2147483648
    %v316 = vor.u32 1.1754944e-38, %v315
    %v317 = vsel %vm314, %v316, %v312
    %v318 = vmul.f32 1.0, %v317
    %v319 = vmul.f32 %v232, %v273
    %v320 = vmul.f32 %v235, %v288
    %v321 = vmul.f32 %v238, %v303
    %v322 = vmul.f32 %v241, %v318
    %v323 = vld [vmem:[%s4] sm:$0xff]
    %v324 = vld [vmem:[%s4 + $0x8] sm:$0xff]
    %v325 = vld [vmem:[%s4 + $0x10] sm:$0xff]
    %v326 = vld [vmem:[%s4 + $0x18] sm:$0xff]
    %v327 = vld [vmem:[%s5] sm:$0xff]
    %v328 = vld [vmem:[%s5 + $0x8] sm:$0xff]
    %v329 = vld [vmem:[%s5 + $0x10] sm:$0xff]
    %v330 = vld [vmem:[%s5 + $0x18] sm:$0xff]
    %332 = vset.pattern.permute.xlu0 0
    %333 = vperm.xlu0 %332, %v327
    %v334 = vpop.permute.xlu0 %333
    %337 = vset.pattern.permute.xlu0 0
    %338 = vperm.xlu0 %337, %v328
    %v339 = vpop.permute.xlu0 %338
    %342 = vset.pattern.permute.xlu0 0
    %343 = vperm.xlu0 %342, %v329
    %v344 = vpop.permute.xlu0 %343
    %347 = vset.pattern.permute.xlu0 0
    %348 = vperm.xlu0 %347, %v330
    %v349 = vpop.permute.xlu0 %348
    %v352 = vsel %vm201, %v323, 0
    %v355 = vsel %vm201, %v324, 0
    %v358 = vsel %vm201, %v325, 0
    %v361 = vsel %vm201, %v326, 0
    %363 = vmatpush.msra.mxu0 0.0
    %364 = vmatpush.msra.mxu0 0.0
    %365 = vmatpush.msra.mxu0 0.0
    %366 = vmatpush.msra.mxu0 0.0
    %367 = vmatpush.msra.mxu0 0.0
    %368 = vmatpush.msra.mxu0 0.0
    %369 = vmatpush.msra.mxu0 0.0
    %370 = vmatpush.msra.mxu0 0.0
    %371 = vmatpush.msra.mxu0 0.0
    %372 = vmatpush.msra.mxu0 0.0
    %373 = vmatpush.msra.mxu0 0.0
    %374 = vmatpush.msra.mxu0 0.0
    %375 = vmatpush.msra.mxu0 %v322
    %376 = vmatpush.msra.mxu0 %v321
    %377 = vmatpush.msra.mxu0 %v320
    %378 = vmatpush.msra.mxu0 %v319
    %379 = vmatmul.f32.gmra.mxu0 %v352
    %v380 = vpop.f32.mrf.mxu0
    %v381 = vadd.f32 %v334, %v380
    %382 = vmatmul.f32.gmra.mxu0 %v355
    %v383 = vpop.f32.mrf.mxu0
    %v384 = vadd.f32 %v339, %v383
    %385 = vmatmul.f32.gmra.mxu0 %v358
    %v386 = vpop.f32.mrf.mxu0
    %v387 = vadd.f32 %v344, %v386
    %388 = vmatmul.f32.gmra.mxu0 %v361
    %v389 = vpop.f32.mrf.mxu0
    %v390 = vadd.f32 %v349, %v389
    %391 = vdwg.mxu0
    %v392 = vxor.u32 %v381, 2147483648
    %v393 = vxor.u32 %v384, 2147483648
    %v394 = vxor.u32 %v387, 2147483648
    %v395 = vxor.u32 %v390, 2147483648
    %v396 = vmul.f32 %v392, 1.442695
    %v397 = vpow.pop %v396
    %v398 = vmul.f32 %v393, 1.442695
    %v399 = vpow.pop %v398
    %v400 = vmul.f32 %v394, 1.442695
    %v401 = vpow.pop %v400
    %v402 = vmul.f32 %v395, 1.442695
    %v403 = vpow.pop %v402
    %v404 = vadd.f32 %v397, 1.0
    %v405 = vadd.f32 %v399, 1.0
    %v406 = vadd.f32 %v401, 1.0
    %v407 = vadd.f32 %v403, 1.0
    %v408 = vrcp.pop %v404
    %v409 = vmul.f32 %v404, %v408
    %v410 = vsub.f32 1.0, %v409
    %v411 = vmul.f32 %v408, %v410
    %v412 = vadd.f32 %v408, %v411
    %vm413 = vweird.f32 %v404
    %vm414 = vweird.f32 %v408
    %vm415 = vmor %vm413, %vm414
    %v416 = vsel %vm415, %v408, %v412
    %v417 = vand.u32 2147483647, %v404
    %vm418 = vcmp.eq.f32.partialorder %v417, 8.507059e+37
    %v419 = vand.u32 %v404, 2147483648
    %v420 = vor.u32 1.1754944e-38, %v419
    %v421 = vsel %vm418, %v420, %v416
    %v422 = vmul.f32 1.0, %v421
    %v423 = vrcp.pop %v405
    %v424 = vmul.f32 %v405, %v423
    %v425 = vsub.f32 1.0, %v424
    %v426 = vmul.f32 %v423, %v425
    %v427 = vadd.f32 %v423, %v426
    %vm428 = vweird.f32 %v405
    %vm429 = vweird.f32 %v423
    %vm430 = vmor %vm428, %vm429
    %v431 = vsel %vm430, %v423, %v427
    %v432 = vand.u32 2147483647, %v405
    %vm433 = vcmp.eq.f32.partialorder %v432, 8.507059e+37
    %v434 = vand.u32 %v405, 2147483648
    %v435 = vor.u32 1.1754944e-38, %v434
    %v436 = vsel %vm433, %v435, %v431
    %v437 = vmul.f32 1.0, %v436
    %v438 = vrcp.pop %v406
    %v439 = vmul.f32 %v406, %v438
    %v440 = vsub.f32 1.0, %v439
    %v441 = vmul.f32 %v438, %v440
    %v442 = vadd.f32 %v438, %v441
    %vm443 = vweird.f32 %v406
    %vm444 = vweird.f32 %v438
    %vm445 = vmor %vm443, %vm444
    %v446 = vsel %vm445, %v438, %v442
    %v447 = vand.u32 2147483647, %v406
    %vm448 = vcmp.eq.f32.partialorder %v447, 8.507059e+37
    %v449 = vand.u32 %v406, 2147483648
    %v450 = vor.u32 1.1754944e-38, %v449
    %v451 = vsel %vm448, %v450, %v446
    %v452 = vmul.f32 1.0, %v451
    %v453 = vrcp.pop %v407
    %v454 = vmul.f32 %v407, %v453
    %v455 = vsub.f32 1.0, %v454
    %v456 = vmul.f32 %v453, %v455
    %v457 = vadd.f32 %v453, %v456
    %vm458 = vweird.f32 %v407
    %vm459 = vweird.f32 %v453
    %vm460 = vmor %vm458, %vm459
    %v461 = vsel %vm460, %v453, %v457
    %v462 = vand.u32 2147483647, %v407
    %vm463 = vcmp.eq.f32.partialorder %v462, 8.507059e+37
    %v464 = vand.u32 %v407, 2147483648
    %v465 = vor.u32 1.1754944e-38, %v464
    %v466 = vsel %vm463, %v465, %v461
    %v467 = vmul.f32 1.0, %v466
    %v468 = vmul.f32 %v381, %v422
    %v469 = vmul.f32 %v384, %v437
    %v470 = vmul.f32 %v387, %v452
    %v471 = vmul.f32 %v390, %v467
    %v472 = vld [vmem:[%s6] sm:$0xff]
    %v473 = vld [vmem:[%s7] sm:$0xff]
    %475 = vset.pattern.permute.xlu0 0
    %476 = vperm.xlu0 %475, %v473
    %v477 = vpop.permute.xlu0 %476
    %v480 = vsel %vm201, %v472, 0
    %482 = vmatpush.msra.mxu0 0.0
    %483 = vmatpush.msra.mxu0 0.0
    %484 = vmatpush.msra.mxu0 0.0
    %485 = vmatpush.msra.mxu0 0.0
    %486 = vmatpush.msra.mxu0 0.0
    %487 = vmatpush.msra.mxu0 0.0
    %488 = vmatpush.msra.mxu0 0.0
    %489 = vmatpush.msra.mxu0 0.0
    %490 = vmatpush.msra.mxu0 0.0
    %491 = vmatpush.msra.mxu0 0.0
    %492 = vmatpush.msra.mxu0 0.0
    %493 = vmatpush.msra.mxu0 0.0
    %494 = vmatpush.msra.mxu0 %v471
    %495 = vmatpush.msra.mxu0 %v470
    %496 = vmatpush.msra.mxu0 %v469
    %497 = vmatpush.msra.mxu0 %v468
    %498 = vmatmul.f32.gmra.mxu0 %v480
    %v499 = vpop.f32.mrf.mxu0
    %v500 = vadd.f32 %v477, %v499
    %501 = vdwg.mxu0
    %502 = vst [vmem:[#allocation2] sm:$0xff] %v500
    // Predicated region
    $region34: #{tpu_custom_call.1} parent=1 // pred_check
      _
    $region35: #{tpu_custom_call.1} parent=1 // pred_check_branch
      %504 = sbr.rel (0) target = $region37
    $region36: #{tpu_custom_call.1} parent=1 // pred_region
      %506 = vsyncadd [#allocation3], 0
      %s508 = sshll.u32 [#allocation2], 4
      %s509 = int_to_ptr.vmem [resolvable:$true] %s508
      %s510 = sshll.u32 %s8, 4
      %s511 = int_to_ptr.hbm [resolvable:$true] %s510
      %513 = dma.vmem_to_hbm [thread:$0]  %s509, 128, %s511, [#allocation3]
    $region37: #{tpu_custom_call.1} parent=1 // pred_fallthru
      _
    // Predicated region
    $region38: #{tpu_custom_call.1} parent=1 // pred_check
      _
    $region39: #{tpu_custom_call.1} parent=1 // pred_check_branch
      %515 = sbr.rel (0) target = $region41
    $region40: #{tpu_custom_call.1} parent=1 // pred_region
      %517 = dma.done [#allocation3], 128
    $region41: #{tpu_custom_call.1} parent=1 // pred_fallthru
      _
    %518 = vsyncpa [#allocation3], 1

</llo_original>
